<compile_context>
chip_gen: v6e
topology: v6e:2x2x1
jax: 0.10.0
libtpu: 0.0.40
codegen_flags: <defaults>
</compile_context>

<pallas_src>
import jax
import jax.numpy as jnp
from jax.experimental import pallas as pl
from jax.experimental.pallas import tpu as pltpu


def splitmax_kernel(a_ref, b_ref, c_ref, o_ref):
    # Each ref is a full lane-dense (rows, lanes) tile holding one 2-channel
    # chunk of the current batch element. Pure VPU elementwise max: 3 full-tile
    # loads + 2 vmax + 1 full-tile store, no layout fixup.
    o_ref[...] = jnp.maximum(a_ref[...], jnp.maximum(b_ref[...], c_ref[...]))


@jax.jit
def split_max(x):
    """SplitMax forward: x (N, 6, H, W) NCHW -> (N, 2, H, W)."""
    N, C, H, W = x.shape
    assert C == 6, "SplitMax expects 6 channels (split into 2+2+2)"
    chunk = 2 * H * W  # one 2-channel chunk is contiguous in NCHW per batch

    # Lane-dense 2D view of each chunk; reshapes only (contiguous), never
    # transposes, so the chunk grouping [0:2], [2:4], [4:6] is preserved.
    if chunk % 128 == 0:
        rows, lanes = chunk // 128, 128
    else:
        rows, lanes = 1, chunk
    x4 = x.reshape(N, 3, rows, lanes)

    def chunk_spec(c):
        # Full tile for chunk c of batch n (leading dims squeezed away).
        return pl.BlockSpec((None, None, rows, lanes),
                            lambda n, c=c: (n, c, 0, 0))

    out = pl.pallas_call(
        splitmax_kernel,
        out_shape=jax.ShapeDtypeStruct((N, rows, lanes), x.dtype),
        grid=(N,),
        in_specs=[chunk_spec(0), chunk_spec(1), chunk_spec(2)],
        out_specs=pl.BlockSpec((None, rows, lanes), lambda n: (n, 0, 0)),
        compiler_params=pltpu.CompilerParams(
            dimension_semantics=("parallel",)),
    )(x4, x4, x4)  # same HBM buffer 3x; DMA'd blocks are disjoint (read once)

    # Free reshape back to NCHW.
    return out.reshape(N, 2, H, W)


if __name__ == "__main__":
    key = jax.random.PRNGKey(0)
    x = jax.random.normal(key, (2, 6, 16, 16), dtype=jnp.float32)

    out = jax.block_until_ready(split_max(x))

    # Reference in plain JAX (mirrors torch.split + torch.max semantics).
    first = x[:, 0:2]
    second = x[:, 2:4]
    third = x[:, 4:6]
    ref = jnp.maximum(first, jnp.maximum(second, third))

    assert out.shape == (2, 2, 16, 16), out.shape
    assert out.dtype == x.dtype
    assert jnp.allclose(out, ref), "mismatch vs reference"
    print("KERNEL_OK")
</pallas_src>

<mosaic_0001>
module attributes {stable_mosaic.version = 11 : i64} {
  func.func @splitmax_kernel(%arg0: i32, %arg1: memref<1x1x4x128xf32, #tpu.memory_space<vmem>>, %arg2: memref<1x1x4x128xf32, #tpu.memory_space<vmem>>, %arg3: memref<1x1x4x128xf32, #tpu.memory_space<vmem>>, %arg4: memref<1x4x128xf32, #tpu.memory_space<vmem>>) attributes {dimension_semantics = [#tpu.dimension_semantics<parallel>], iteration_bounds = array<i64: 2>, scalar_prefetch = 0 : i64, scratch_operands = 0 : i64, tpu.core_type = #tpu.core_type<tc>, window_params = [{transform_indices = @transform_0, window_bounds = array<i64: 1, 1, 4, 128>}, {transform_indices = @transform_1, window_bounds = array<i64: 1, 1, 4, 128>}, {transform_indices = @transform_2, window_bounds = array<i64: 1, 1, 4, 128>}, {transform_indices = @transform_3, window_bounds = array<i64: 1, 4, 128>}]} {
    %c0 = arith.constant 0 : index
    %c0_0 = arith.constant 0 : index
    %c0_1 = arith.constant 0 : index
    %c0_2 = arith.constant 0 : index
    %0 = vector.load %arg1[%c0, %c0_0, %c0_1, %c0_2] : memref<1x1x4x128xf32, #tpu.memory_space<vmem>>, vector<1x1x4x128xf32>
    %1 = vector.shape_cast %0 : vector<1x1x4x128xf32> to vector<4x128xf32>
    %c0_3 = arith.constant 0 : index
    %c0_4 = arith.constant 0 : index
    %c0_5 = arith.constant 0 : index
    %c0_6 = arith.constant 0 : index
    %2 = vector.load %arg2[%c0_3, %c0_4, %c0_5, %c0_6] : memref<1x1x4x128xf32, #tpu.memory_space<vmem>>, vector<1x1x4x128xf32>
    %3 = vector.shape_cast %2 : vector<1x1x4x128xf32> to vector<4x128xf32>
    %c0_7 = arith.constant 0 : index
    %c0_8 = arith.constant 0 : index
    %c0_9 = arith.constant 0 : index
    %c0_10 = arith.constant 0 : index
    %4 = vector.load %arg3[%c0_7, %c0_8, %c0_9, %c0_10] : memref<1x1x4x128xf32, #tpu.memory_space<vmem>>, vector<1x1x4x128xf32>
    %5 = vector.shape_cast %4 : vector<1x1x4x128xf32> to vector<4x128xf32>
    %6 = arith.maximumf %3, %5 : vector<4x128xf32>
    %7 = arith.maximumf %1, %6 : vector<4x128xf32>
    %c0_11 = arith.constant 0 : index
    %c0_12 = arith.constant 0 : index
    %c0_13 = arith.constant 0 : index
    %8 = vector.load %arg4[%c0_11, %c0_12, %c0_13] : memref<1x4x128xf32, #tpu.memory_space<vmem>>, vector<1x4x128xf32>
    %9 = vector.shape_cast %8 : vector<1x4x128xf32> to vector<4x128xf32>
    %10 = vector.shape_cast %7 : vector<4x128xf32> to vector<1x4x128xf32>
    tpu.vector_store %arg4[%c0_11, %c0_12, %c0_13], %10 {strides = array<i32>} : memref<1x4x128xf32, #tpu.memory_space<vmem>>, vector<1x4x128xf32>,
    return
  }
  func.func @transform_0(%arg0: i32) -> (i32, i32, i32, i32) {
    %c0_i32 = arith.constant 0 : i32
    %c0_i32_0 = arith.constant 0 : i32
    %c0_i32_1 = arith.constant 0 : i32
    %c0_i32_2 = arith.constant 0 : i32
    return %arg0, %c0_i32, %c0_i32_0, %c0_i32_1 : i32, i32, i32, i32
  }
  func.func @transform_1(%arg0: i32) -> (i32, i32, i32, i32) {
    %c1_i32 = arith.constant 1 : i32
    %c0_i32 = arith.constant 0 : i32
    %c0_i32_0 = arith.constant 0 : i32
    %c0_i32_1 = arith.constant 0 : i32
    return %arg0, %c1_i32, %c0_i32, %c0_i32_0 : i32, i32, i32, i32
  }
  func.func @transform_2(%arg0: i32) -> (i32, i32, i32, i32) {
    %c2_i32 = arith.constant 2 : i32
    %c0_i32 = arith.constant 0 : i32
    %c0_i32_0 = arith.constant 0 : i32
    %c0_i32_1 = arith.constant 0 : i32
    return %arg0, %c2_i32, %c0_i32, %c0_i32_0 : i32, i32, i32, i32
  }
  func.func @transform_3(%arg0: i32) -> (i32, i32, i32) {
    %c0_i32 = arith.constant 0 : i32
    %c0_i32_0 = arith.constant 0 : i32
    %c0_i32_1 = arith.constant 0 : i32
    return %arg0, %c0_i32, %c0_i32_0 : i32, i32, i32
  }
}

</mosaic_0001>

<llo_original>
// kernel: split_max.1
$region0: #{split_max.1}
  #allocation0 [shape = 'u32[]', space=smem, size = 0x4, offset = 0x4, fixed_abs, tag = 'smem constant byte address 0x4 - core index']
  #allocation1 [shape = 'u32[144,128]{1,0:T(1,128)}', space=vmem, size = 0x12000, scoped, tag = 'internal scratch']
  %s0 = inlined_call_operand.vmem [shape: f32[2,3,4,128], index: 0, kind: input, shape index: {}, may-alias: {0,1,2}]
  %s1 = inlined_call_operand.vmem [shape: f32[2,3,4,128], index: 1, kind: input, shape index: {}, may-alias: {0,1,2}]
  %s2 = inlined_call_operand.vmem [shape: f32[2,3,4,128], index: 2, kind: input, shape index: {}, may-alias: {0,1,2}]
  %s3 = inlined_call_operand.vmem [shape: f32[2,4,128], index: 3, kind: output, shape index: {}]
  %s4 = sld [smem:[#allocation0]]
  $region45: #{split_max.1} parent=0
    _
  %s6 = ssub.s32 1, %s4
  %s7 = scalar_select 0, %s6, %s4
  loop: start=0, step=1, limit=4
  $region2: #{split_max.1} parent=0 // loop_pre_header
    _
  $region3: #{split_max.1} parent=0 // loop_header
    %s9 = sphi 0, %s13
    %p10 = scmp.ge.s32.totalorder %s9, 4
    %s19 = sphi 0, %s21
    %s22 = sphi 0, %s19
    %s23 = sphi 0, %s22
    %s39 = sphi 0, %s23
    %s45 = sphi 0, %s47
    %s48 = sphi 0, %s45
    %s49 = sphi 0, %s48
    %s65 = sphi 0, %s49
    %s71 = sphi 0, %s73
    %s74 = sphi 0, %s71
    %s75 = sphi 0, %s74
    %s91 = sphi 0, %s75
    %s97 = sphi 0, %s99
    %s100 = sphi 0, %s97
    %s101 = sphi 0, %s100
    %s117 = sphi 0, %s101
  $region4: #{split_max.1} parent=0 // loop_header_branch
    %12 = sbr.rel (%p10) target = $region8
  $region5: #{split_max.1} parent=0 // loop_body
    %s14 = ssub.s32 %s9, 1
    %s15 = ssub.s32 %s9, 2
    %s16 = sadd.s32 %s9, 1
    %s17 = ssub.s32 %s9, %s16
    %p18 = scmp.eq.s32.totalorder %s17, 0
    %s20 = sadd.s32 %s19, 1
    %s21 = scalar_select %p18, %s19, %s20
    %p24 = pneg %p18
    %p25 = scmp.eq.s32.totalorder %s9, 1
    %p26 = por %p24, %p25
    %p27 = scmp.ne.s32.totalorder %s19, %s22
    %p28 = scmp.eq.s32.totalorder %s9, 0
    %p29 = por %p27, %p28
    %p30 = scmp.ne.s32.totalorder %s19, %s22
    %p31 = scmp.eq.s32.totalorder %s14, 1
    %p32 = por %p30, %p31
    %p33 = scmp.ne.s32.totalorder %s22, %s23
    %p34 = scmp.eq.s32.totalorder %s14, 0
    %p35 = por %p33, %p34
    %p36 = scmp.ne.s32.totalorder %s22, %s23
    %p37 = scmp.eq.s32.totalorder %s15, 1
    %p38 = por %p36, %p37
    %p40 = scmp.ne.s32.totalorder %s23, %s39
    %p41 = scmp.eq.s32.totalorder %s15, 0
    %p42 = por %p40, %p41
    %s43 = ssub.s32 %s9, %s16
    %p44 = scmp.eq.s32.totalorder %s43, 0
    %s46 = sadd.s32 %s45, 1
    %s47 = scalar_select %p44, %s45, %s46
    %p50 = pneg %p44
    %p51 = scmp.eq.s32.totalorder %s9, 1
    %p52 = por %p50, %p51
    %p53 = scmp.ne.s32.totalorder %s45, %s48
    %p54 = scmp.eq.s32.totalorder %s9, 0
    %p55 = por %p53, %p54
    %p56 = scmp.ne.s32.totalorder %s45, %s48
    %p57 = scmp.eq.s32.totalorder %s14, 1
    %p58 = por %p56, %p57
    %p59 = scmp.ne.s32.totalorder %s48, %s49
    %p60 = scmp.eq.s32.totalorder %s14, 0
    %p61 = por %p59, %p60
    %p62 = scmp.ne.s32.totalorder %s48, %s49
    %p63 = scmp.eq.s32.totalorder %s15, 1
    %p64 = por %p62, %p63
    %p66 = scmp.ne.s32.totalorder %s49, %s65
    %p67 = scmp.eq.s32.totalorder %s15, 0
    %p68 = por %p66, %p67
    %s69 = ssub.s32 %s9, %s16
    %p70 = scmp.eq.s32.totalorder %s69, 0
    %s72 = sadd.s32 %s71, 1
    %s73 = scalar_select %p70, %s71, %s72
    %p76 = pneg %p70
    %p77 = scmp.eq.s32.totalorder %s9, 1
    %p78 = por %p76, %p77
    %p79 = scmp.ne.s32.totalorder %s71, %s74
    %p80 = scmp.eq.s32.totalorder %s9, 0
    %p81 = por %p79, %p80
    %p82 = scmp.ne.s32.totalorder %s71, %s74
    %p83 = scmp.eq.s32.totalorder %s14, 1
    %p84 = por %p82, %p83
    %p85 = scmp.ne.s32.totalorder %s74, %s75
    %p86 = scmp.eq.s32.totalorder %s14, 0
    %p87 = por %p85, %p86
    %p88 = scmp.ne.s32.totalorder %s74, %s75
    %p89 = scmp.eq.s32.totalorder %s15, 1
    %p90 = por %p88, %p89
    %p92 = scmp.ne.s32.totalorder %s75, %s91
    %p93 = scmp.eq.s32.totalorder %s15, 0
    %p94 = por %p92, %p93
    %s95 = ssub.s32 %s9, %s16
    %p96 = scmp.eq.s32.totalorder %s95, 0
    %s98 = sadd.s32 %s97, 1
    %s99 = scalar_select %p96, %s97, %s98
    %p102 = pneg %p96
    %p103 = scmp.eq.s32.totalorder %s9, 1
    %p104 = por %p102, %p103
    %p105 = scmp.ne.s32.totalorder %s97, %s100
    %p106 = scmp.eq.s32.totalorder %s9, 0
    %p107 = por %p105, %p106
    %p108 = scmp.ne.s32.totalorder %s97, %s100
    %p109 = scmp.eq.s32.totalorder %s14, 1
    %p110 = por %p108, %p109
    %p111 = scmp.ne.s32.totalorder %s100, %s101
    %p112 = scmp.eq.s32.totalorder %s14, 0
    %p113 = por %p111, %p112
    %p114 = scmp.ne.s32.totalorder %s100, %s101
    %p115 = scmp.eq.s32.totalorder %s15, 1
    %p116 = por %p114, %p115
    %p118 = scmp.ne.s32.totalorder %s101, %s117
    %p119 = scmp.eq.s32.totalorder %s15, 0
    %p120 = por %p118, %p119
    %p121 = scmp.le.s32.totalorder 1, %s9
    %p122 = scmp.lt.s32.totalorder %s9, 3
    %p123 = pnand %p121, %p122
    %p124 = pneg %p123
    // Predicated region
    $region9: #{split_max.1} parent=5 // pred_check
      _
    $region10: #{split_max.1} parent=5 // pred_check_branch
      %126 = sbr.rel (%p123) target = $region12
    $region11: #{split_max.1} parent=5 // pred_region
      %s127 = ssub.s32 %s9, 1
    $region12: #{split_max.1} parent=5 // pred_fallthru
      _
    %p128 = scmp.lt.s32.totalorder %s9, 2
    // Predicated region
    $region13: #{split_max.1} parent=5 // pred_check
      %p129 = pneg %p128
    $region14: #{split_max.1} parent=5 // pred_check_branch
      %131 = sbr.rel (%p129) target = $region16
    $region15: #{split_max.1} parent=5 // pred_region
      // Predicated region
      $region17: #{split_max.1} parent=15 // pred_check
        %p132 = pneg %p29
      $region18: #{split_max.1} parent=15 // pred_check_branch
        %134 = sbr.rel (%p132) target = $region20
      $region19: #{split_max.1} parent=15 // pred_region
        %p135 = scmp.lt.s32.totalorder %s9, 1
        %s136 = scalar_select %p135, %s9, 1
        %s137 = smul.addr %s136, 3
        %s138 = smul.addr %s137, 4
        %s139 = scalar_lea.vmem %s0, %s138
      $region20: #{split_max.1} parent=15 // pred_fallthru
        _
      // Predicated region
      $region21: #{split_max.1} parent=15 // pred_check
        %p140 = pneg %p55
      $region22: #{split_max.1} parent=15 // pred_check_branch
        %142 = sbr.rel (%p140) target = $region24
      $region23: #{split_max.1} parent=15 // pred_region
        %p143 = scmp.lt.s32.totalorder %s9, 1
        %s144 = scalar_select %p143, %s9, 1
        %s145 = smul.addr %s144, 3
        %s146 = sadd.s32 1, %s145
        %s147 = smul.addr %s146, 4
        %s148 = scalar_lea.vmem %s1, %s147
      $region24: #{split_max.1} parent=15 // pred_fallthru
        _
      // Predicated region
      $region25: #{split_max.1} parent=15 // pred_check
        %p149 = pneg %p81
      $region26: #{split_max.1} parent=15 // pred_check_branch
        %151 = sbr.rel (%p149) target = $region28
      $region27: #{split_max.1} parent=15 // pred_region
        %p152 = scmp.lt.s32.totalorder %s9, 1
        %s153 = scalar_select %p152, %s9, 1
        %s154 = smul.addr %s153, 3
        %s155 = sadd.s32 2, %s154
        %s156 = smul.addr %s155, 4
        %s157 = scalar_lea.vmem %s2, %s156
      $region28: #{split_max.1} parent=15 // pred_fallthru
        _
    $region16: #{split_max.1} parent=5 // pred_fallthru
      _
    %p158 = scmp.le.s32.totalorder 1, %s9
    %p159 = scmp.lt.s32.totalorder %s9, 3
    %p160 = pnand %p158, %p159
    %p161 = pneg %p160
    // Predicated region
    $region29: #{split_max.1} parent=5 // pred_check
      _
    $region30: #{split_max.1} parent=5 // pred_check_branch
      %163 = sbr.rel (%p160) target = $region32
    $region31: #{split_max.1} parent=5 // pred_region
      %s164 = ssub.s32 %s9, 1
      %p165 = scmp.lt.s32.totalorder %s14, 1
      %s166 = scalar_select %p165, %s14, 1
      %s167 = smul.addr %s166, 3
      %s168 = smul.addr %s167, 4
      %s169 = scalar_lea.vmem %s0, %s168
      %p170 = pneg %p35
      %p171 = pneg %p32
      %p172 = scmp.lt.s32.totalorder %s14, 1
      %s173 = scalar_select %p172, %s14, 1
      %s174 = smul.addr %s173, 3
      %s175 = sadd.s32 1, %s174
      %s176 = smul.addr %s175, 4
      %s177 = scalar_lea.vmem %s1, %s176
      %p178 = pneg %p61
      %p179 = pneg %p58
      %p180 = scmp.lt.s32.totalorder %s14, 1
      %s181 = scalar_select %p180, %s14, 1
      %s182 = smul.addr %s181, 3
      %s183 = sadd.s32 2, %s182
      %s184 = smul.addr %s183, 4
      %s185 = scalar_lea.vmem %s2, %s184
      %p186 = pneg %p87
      %p187 = pneg %p84
      %p188 = pneg %p113
      %p189 = pneg %p110
      %p190 = scmp.lt.s32.totalorder %s14, 1
      %s191 = scalar_select %p190, %s14, 1
      %s192 = smul.addr %s191, 4
      %s193 = scalar_lea.vmem %s3, %s192
      %p194 = scmp.lt.s32.totalorder %s14, 1
      %s195 = scalar_select %p194, %s14, 1
      %s196 = smul.addr %s195, 3
      %s197 = smul.addr %s196, 4
      %s198 = scalar_lea.vmem %s0, %s197
      %p199 = scmp.lt.s32.totalorder %s14, 1
      %s200 = scalar_select %p199, %s14, 1
      %s201 = smul.addr %s200, 3
      %s202 = sadd.s32 1, %s201
      %s203 = smul.addr %s202, 4
      %s204 = scalar_lea.vmem %s1, %s203
      %p205 = scmp.lt.s32.totalorder %s14, 1
      %s206 = scalar_select %p205, %s14, 1
      %s207 = smul.addr %s206, 3
      %s208 = sadd.s32 2, %s207
      %s209 = smul.addr %s208, 4
      %s210 = scalar_lea.vmem %s2, %s209
      %p211 = scmp.lt.s32.totalorder %s14, 1
      %s212 = scalar_select %p211, %s14, 1
      %s213 = smul.addr %s212, 4
      %s214 = scalar_lea.vmem %s3, %s213
      %v215 = vld [vmem:[%s198] sm:$0xf]
      %v216 = vld [vmem:[%s204] sm:$0xf]
      %v217 = vld [vmem:[%s210] sm:$0xf]
      %v218 = vmax.f32 %v216, %v217
      %v219 = vmax.f32 %v215, %v218
      %220 = vst [vmem:[%s214] sm:$0xf] %v219
      %p221 = scmp.lt.s32.totalorder %s14, 1
      %s222 = scalar_select %p221, %s14, 1
      %s223 = smul.addr %s222, 4
      %s224 = scalar_lea.vmem %s3, %s223
      // Predicated region
      $region33: #{split_max.1} parent=31 // pred_check
        %p225 = pneg %p110
      $region34: #{split_max.1} parent=31 // pred_check_branch
        %227 = sbr.rel (%p225) target = $region36
      $region35: #{split_max.1} parent=31 // pred_region
        _
      $region36: #{split_max.1} parent=31 // pred_fallthru
        _
    $region32: #{split_max.1} parent=5 // pred_fallthru
      _
    %p228 = scmp.le.s32.totalorder 2, %s9
    // Predicated region
    $region37: #{split_max.1} parent=5 // pred_check
      %p229 = pneg %p228
    $region38: #{split_max.1} parent=5 // pred_check_branch
      %231 = sbr.rel (%p229) target = $region40
    $region39: #{split_max.1} parent=5 // pred_region
      %s232 = ssub.s32 %s9, 2
      // Predicated region
      $region41: #{split_max.1} parent=39 // pred_check
        %p233 = pneg %p116
      $region42: #{split_max.1} parent=39 // pred_check_branch
        %235 = sbr.rel (%p233) target = $region44
      $region43: #{split_max.1} parent=39 // pred_region
        %p236 = scmp.lt.s32.totalorder %s15, 1
        %s237 = scalar_select %p236, %s15, 1
        %s238 = smul.addr %s237, 4
        %s239 = scalar_lea.vmem %s3, %s238
      $region44: #{split_max.1} parent=39 // pred_fallthru
        _
    $region40: #{split_max.1} parent=5 // pred_fallthru
      _
  $region6: #{split_max.1} parent=0 // loop_footer
    %s13 = sadd.s32 1, %s9
  $region7: #{split_max.1} parent=0 // loop_footer_branch
    %8 = sbr.rel target = $region3
  $region8: #{split_max.1} parent=0 // loop_exit
    _

</llo_original>
